<compile_context>
chip_gen: v7x
topology: tpu7x:2x2x1
jax: 0.10.0
libtpu: 0.0.40
codegen_flags: <defaults>
</compile_context>

<pallas_src>
import math

import jax
import jax.numpy as jnp
from jax.experimental import pallas as pl
from jax.experimental.pallas import tpu as pltpu


_LANE = 128        # feature dim padded to a multiple of this (lane-dense)
_ROW_ALIGN = 16    # bf16 sublane packing: batch tiles kept multiples of 16
_SUBLANE = 8


def _round_up(x, m):
    return (x + m - 1) // m * m


def _vmem_capacity_bytes():
    try:
        return int(pltpu.get_tpu_info().vmem_capacity_bytes)
    except Exception:
        return 64 << 20   # conservative default (v7x per-TensorCore)


def _choose_tile_b(batch, dim_p, out_itemsize, resident_param_bytes):
    """Chip-aware batch tile: fits VMEM, <=512 rows, multiple steps only when
    the batch is large enough for the pipeline/megacore to benefit."""
    vmem = _vmem_capacity_bytes()
    budget = max(4 << 20, vmem // 2 - resident_param_bytes)
    # per-row VMEM: bf16 x tile (double-buffered) + out tile (double-buffered)
    # + f32 in-kernel intermediates (h, z, bf16 staging), conservatively.
    per_row = dim_p * (2 * 2 + 2 * out_itemsize + 16)
    max_rows = max(_ROW_ALIGN, (budget // per_row) // _ROW_ALIGN * _ROW_ALIGN)
    if batch <= 256:
        # Single tile: splitting a tiny batch only adds ~0.35us per grid step
        # on single-core v5e/v6e and buys no overlap.
        tile = _round_up(batch, _ROW_ALIGN)
    else:
        # Target ~4-8 grid steps with 128-512 row tiles so the x/out DMA
        # overlaps compute and v7x megacore gets >=2 steps per core.
        tile = _round_up(pl.cdiv(batch, 8), _ROW_ALIGN)
        tile = min(max(tile, 128), 512)
    return max(_ROW_ALIGN, min(tile, max_rows))


def _vmem_limit_bytes(tile_b, dim_p, out_itemsize, resident_param_bytes):
    io = 2 * tile_b * dim_p * 2 + 2 * tile_b * dim_p * out_itemsize
    scratch = 6 * tile_b * dim_p * 4
    need = resident_param_bytes + io + scratch
    cap = _vmem_capacity_bytes()
    return int(min(cap, max(32 << 20, 2 * need + (4 << 20))))


def _make_generator_kernel(n_layers):
    """Fused Generator kernel: all (Linear∘BN folded + ReLU [+ residual]) blocks."""

    def kernel(x_ref, w_ref, s_ref, out_ref):
        # x_ref:  (tile_b, dim_p) bf16
        # w_ref:  (n_layers, dim_p, dim_p) bf16   -- BN-folded weights
        # s_ref:  (n_layers, dim_p)        f32    -- BN-folded shifts
        h = x_ref[...].astype(jnp.float32)        # residual chain kept in f32
        for i in range(n_layers):
            z = jnp.dot(h.astype(jnp.bfloat16), w_ref[i],
                        preferred_element_type=jnp.float32)
            z = jnp.maximum(z + s_ref[i:i + 1, :], 0.0)   # folded BN + ReLU
            if i < n_layers - 1:
                h = h + z                                 # ResidualFC
            else:
                h = z                                     # final block: no residual
        out_ref[...] = h.astype(out_ref.dtype)

    return kernel


def _pallas_forward(x_p, w_all, s_all, *, tile_b, grid, out_dtype, vmem_limit,
                    flops, bytes_accessed, single_buffer_params):
    n_layers, dim_p, _ = w_all.shape
    B_p = x_p.shape[0]
    param_kw = dict(pipeline_mode=pl.Buffered(1)) if single_buffer_params else {}
    in_specs = [
        pl.BlockSpec((tile_b, dim_p), lambda i: (i, 0)),
        pl.BlockSpec(w_all.shape, lambda i: (0, 0, 0), **param_kw),
        pl.BlockSpec(s_all.shape, lambda i: (0, 0), **param_kw),
    ]
    out_specs = pl.BlockSpec((tile_b, dim_p), lambda i: (i, 0))
    return pl.pallas_call(
        _make_generator_kernel(n_layers),
        out_shape=jax.ShapeDtypeStruct((B_p, dim_p), out_dtype),
        grid=grid,
        in_specs=in_specs,
        out_specs=out_specs,
        compiler_params=pltpu.CompilerParams(
            dimension_semantics=("parallel",),
            vmem_limit_bytes=vmem_limit),
        cost_estimate=pl.CostEstimate(
            flops=flops, transcendentals=0, bytes_accessed=bytes_accessed),
    )(x_p, w_all, s_all)


def generator_forward(x, params, *, tile_b=None, eps=1e-5, out_dtype=None):
    """Run the Generator MLP on TPU via a single fused Pallas kernel.

    x:      (B, dim) random input
    params: list of per-layer dicts with keys
            'w' (dim, dim) [stored (in, out)], 'b' (dim,),
            'gamma', 'beta', 'running_mean', 'running_var' (all (dim,)).
            The first len(params)-1 layers are ResidualFC blocks; the last is
            the final Linear + BN + ReLU (no residual).
    """
    n_layers = len(params)
    B, dim = x.shape
    dim_p = _round_up(dim, _LANE)
    out_dtype = x.dtype if out_dtype is None else out_dtype
    out_itemsize = jnp.dtype(out_dtype).itemsize

    # Fold eval-mode BN into the linear layer and pad to lane-dense width.
    # Padded weight columns and shifts are zero, so padded lanes stay exactly
    # zero through the whole residual chain.
    w_list, s_list = [], []
    for p in params:
        scale = p["gamma"].astype(jnp.float32) / jnp.sqrt(
            p["running_var"].astype(jnp.float32) + eps)
        shift = p["beta"].astype(jnp.float32) - p["running_mean"].astype(jnp.float32) * scale
        w_fold = p["w"].astype(jnp.float32) * scale[None, :]
        s_fold = p["b"].astype(jnp.float32) * scale + shift
        w_list.append(jnp.zeros((dim_p, dim_p), jnp.float32).at[:dim, :dim].set(w_fold))
        s_list.append(jnp.zeros((dim_p,), jnp.float32).at[:dim].set(s_fold))
    w_all = jnp.stack(w_list).astype(jnp.bfloat16)   # (n_layers, dim_p, dim_p)
    s_all = jnp.stack(s_list)                        # (n_layers, dim_p) f32

    # Worst-case resident parameter VMEM (assume double-buffered).
    resident_param_bytes = 2 * (w_all.size * 2 + s_all.size * 4)

    if tile_b is None:
        tile_b = _choose_tile_b(B, dim_p, out_itemsize, resident_param_bytes)
    tile_b = max(_ROW_ALIGN, _round_up(tile_b, _ROW_ALIGN))
    B_p = _round_up(B, tile_b)
    grid = (B_p // tile_b,)

    # x streamed as bf16 (halves activation read traffic on an HBM-bound
    # kernel); padded rows/lanes are zero and padded rows are discarded below.
    x_p = jnp.zeros((B_p, dim_p), jnp.bfloat16).at[:B, :dim].set(
        x.astype(jnp.bfloat16))

    vmem_limit = _vmem_limit_bytes(tile_b, dim_p, out_itemsize,
                                   resident_param_bytes)
    flops = 2 * B_p * dim_p * dim_p * n_layers
    bytes_accessed = (x_p.size * 2 + B_p * dim_p * out_itemsize
                      + w_all.size * 2 + s_all.size * 4)

    kwargs = dict(tile_b=tile_b, grid=grid, out_dtype=out_dtype,
                  vmem_limit=vmem_limit, flops=flops,
                  bytes_accessed=bytes_accessed)
    try:
        out_p = _pallas_forward(x_p, w_all, s_all,
                                single_buffer_params=True, **kwargs)
        out_p.block_until_ready()
    except Exception:
        # Fallback if this JAX build rejects pl.Buffered(1) on the outer
        # pallas_call pipeline (or under tracing): default double buffering.
        out_p = _pallas_forward(x_p, w_all, s_all,
                                single_buffer_params=False, **kwargs)

    return out_p[:B, :dim]


def init_generator_params(key, random_dim, hidden_dim, dtype=jnp.float32):
    """Deterministic init mirroring nn.Linear defaults + non-trivial BN stats."""
    dim = random_dim
    for h in hidden_dim:
        assert h == dim  # Generator requires every hidden width == random_dim
    n_layers = len(hidden_dim)  # (len-1) ResidualFC blocks + final block
    bound = 1.0 / math.sqrt(dim)
    params = []
    for _ in range(n_layers):
        key, kw, kb, kg, kbe, km, kv = jax.random.split(key, 7)
        params.append(dict(
            w=jax.random.uniform(kw, (dim, dim), dtype, -bound, bound),
            b=jax.random.uniform(kb, (dim,), dtype, -bound, bound),
            gamma=jax.random.uniform(kg, (dim,), dtype, 0.5, 1.5),
            beta=jax.random.uniform(kbe, (dim,), dtype, -0.1, 0.1),
            running_mean=jax.random.uniform(km, (dim,), dtype, -0.1, 0.1),
            running_var=jax.random.uniform(kv, (dim,), dtype, 0.5, 1.5),
        ))
    return params


def generator_reference(x, params, eps=1e-5):
    """Pure-JAX f32 reference of the same forward (eval-mode BN)."""
    h = x.astype(jnp.float32)
    n = len(params)
    for i, p in enumerate(params):
        z = h @ p["w"].astype(jnp.float32) + p["b"].astype(jnp.float32)
        s = p["gamma"].astype(jnp.float32) / jnp.sqrt(
            p["running_var"].astype(jnp.float32) + eps)
        t = p["beta"].astype(jnp.float32) - p["running_mean"].astype(jnp.float32) * s
        z = jnp.maximum(z * s + t, 0.0)
        h = h + z if i < n - 1 else z
    return h.astype(x.dtype)


if __name__ == "__main__":
    # Small shapes consistent with Generator.forward:
    #   input (batch, random_dim); hidden_dim widths all equal random_dim.
    batch = 64
    random_dim = 128
    hidden_dim = (128, 128, 128)   # 2 ResidualFC blocks + final Linear/BN/ReLU
    bn_decay = 0.01                # unused at inference (running stats supplied)

    key = jax.random.PRNGKey(0)
    key, kx = jax.random.split(key)
    x = jax.random.normal(kx, (batch, random_dim), dtype=jnp.float32)

    params = init_generator_params(key, random_dim, hidden_dim)

    out = jax.block_until_ready(generator_forward(x, params))
    ref = generator_reference(x, params)

    assert out.shape == (batch, random_dim)
    # bf16 streaming of x / folded weights loosens precision vs the f32 ref.
    assert jnp.allclose(out, ref, atol=5e-2, rtol=5e-2), float(
        jnp.max(jnp.abs(out - ref)))

    print("KERNEL_OK")
</pallas_src>

<mosaic_0001>
module attributes {stable_mosaic.version = 11 : i64} {
  func.func @kernel(%arg0: i32, %arg1: memref<64x128xbf16, #tpu.memory_space<vmem>>, %arg2: memref<3x128x128xbf16, #tpu.memory_space<vmem>>, %arg3: memref<3x128xf32, #tpu.memory_space<vmem>>, %arg4: memref<64x128xf32, #tpu.memory_space<vmem>>) attributes {dimension_semantics = [#tpu.dimension_semantics<parallel>], iteration_bounds = array<i64: 1>, scalar_prefetch = 0 : i64, scratch_operands = 0 : i64, tpu.core_type = #tpu.core_type<tc>, window_params = [{transform_indices = @transform_0, window_bounds = array<i64: 64, 128>}, {pipeline_mode = #tpu.pipeline_mode<synchronous>, transform_indices = @transform_1, window_bounds = array<i64: 3, 128, 128>}, {pipeline_mode = #tpu.pipeline_mode<synchronous>, transform_indices = @transform_2, window_bounds = array<i64: 3, 128>}, {transform_indices = @transform_3, window_bounds = array<i64: 64, 128>}]} {
    %c0 = arith.constant 0 : index
    %c0_0 = arith.constant 0 : index
    %0 = vector.load %arg1[%c0, %c0_0] : memref<64x128xbf16, #tpu.memory_space<vmem>>, vector<64x128xbf16>
    %1 = arith.extf %0 : vector<64x128xbf16> to vector<64x128xf32>
    %2 = arith.truncf %1 : vector<64x128xf32> to vector<64x128xbf16>
    %c0_1 = arith.constant 0 : index
    %c0_2 = arith.constant 0 : index
    %c0_3 = arith.constant 0 : index
    %3 = vector.load %arg2[%c0_1, %c0_2, %c0_3] : memref<3x128x128xbf16, #tpu.memory_space<vmem>>, vector<1x128x128xbf16>
    %4 = vector.shape_cast %3 : vector<1x128x128xbf16> to vector<128x128xbf16>
    %cst = arith.constant dense<0.000000e+00> : vector<64x128xf32>
    %5 = tpu.matmul %2, %4, %cst {dimension_numbers = #tpu.dot_dimension_numbers<[1], [0], [0], [1], [0, 0, 1, 1], [], []>} : vector<64x128xbf16>, vector<128x128xbf16>, vector<64x128xf32> -> vector<64x128xf32>
    %c0_4 = arith.constant 0 : index
    %c0_5 = arith.constant 0 : index
    %6 = vector.load %arg3[%c0_4, %c0_5] : memref<3x128xf32, #tpu.memory_space<vmem>>, vector<1x128xf32>
    %7 = vector.broadcast %6 : vector<1x128xf32> to vector<64x128xf32>
    %8 = arith.addf %5, %7 : vector<64x128xf32>
    %cst_6 = arith.constant 0.000000e+00 : f32
    %9 = vector.broadcast %cst_6 : f32 to vector<64x128xf32>
    %10 = arith.maximumf %8, %9 : vector<64x128xf32>
    %11 = arith.addf %1, %10 : vector<64x128xf32>
    %12 = arith.truncf %11 : vector<64x128xf32> to vector<64x128xbf16>
    %c1 = arith.constant 1 : index
    %c0_7 = arith.constant 0 : index
    %c0_8 = arith.constant 0 : index
    %13 = vector.load %arg2[%c1, %c0_7, %c0_8] : memref<3x128x128xbf16, #tpu.memory_space<vmem>>, vector<1x128x128xbf16>
    %14 = vector.shape_cast %13 : vector<1x128x128xbf16> to vector<128x128xbf16>
    %cst_9 = arith.constant dense<0.000000e+00> : vector<64x128xf32>
    %15 = tpu.matmul %12, %14, %cst_9 {dimension_numbers = #tpu.dot_dimension_numbers<[1], [0], [0], [1], [0, 0, 1, 1], [], []>} : vector<64x128xbf16>, vector<128x128xbf16>, vector<64x128xf32> -> vector<64x128xf32>
    %c1_10 = arith.constant 1 : index
    %c0_11 = arith.constant 0 : index
    %16 = vector.load %arg3[%c1_10, %c0_11] : memref<3x128xf32, #tpu.memory_space<vmem>>, vector<1x128xf32>
    %17 = vector.broadcast %16 : vector<1x128xf32> to vector<64x128xf32>
    %18 = arith.addf %15, %17 : vector<64x128xf32>
    %cst_12 = arith.constant 0.000000e+00 : f32
    %19 = vector.broadcast %cst_12 : f32 to vector<64x128xf32>
    %20 = arith.maximumf %18, %19 : vector<64x128xf32>
    %21 = arith.addf %11, %20 : vector<64x128xf32>
    %22 = arith.truncf %21 : vector<64x128xf32> to vector<64x128xbf16>
    %c2 = arith.constant 2 : index
    %c0_13 = arith.constant 0 : index
    %c0_14 = arith.constant 0 : index
    %23 = vector.load %arg2[%c2, %c0_13, %c0_14] : memref<3x128x128xbf16, #tpu.memory_space<vmem>>, vector<1x128x128xbf16>
    %24 = vector.shape_cast %23 : vector<1x128x128xbf16> to vector<128x128xbf16>
    %cst_15 = arith.constant dense<0.000000e+00> : vector<64x128xf32>
    %25 = tpu.matmul %22, %24, %cst_15 {dimension_numbers = #tpu.dot_dimension_numbers<[1], [0], [0], [1], [0, 0, 1, 1], [], []>} : vector<64x128xbf16>, vector<128x128xbf16>, vector<64x128xf32> -> vector<64x128xf32>
    %c2_16 = arith.constant 2 : index
    %c0_17 = arith.constant 0 : index
    %26 = vector.load %arg3[%c2_16, %c0_17] : memref<3x128xf32, #tpu.memory_space<vmem>>, vector<1x128xf32>
    %27 = vector.broadcast %26 : vector<1x128xf32> to vector<64x128xf32>
    %28 = arith.addf %25, %27 : vector<64x128xf32>
    %cst_18 = arith.constant 0.000000e+00 : f32
    %29 = vector.broadcast %cst_18 : f32 to vector<64x128xf32>
    %30 = arith.maximumf %28, %29 : vector<64x128xf32>
    %c0_19 = arith.constant 0 : index
    %c0_20 = arith.constant 0 : index
    %31 = vector.load %arg4[%c0_19, %c0_20] : memref<64x128xf32, #tpu.memory_space<vmem>>, vector<64x128xf32>
    tpu.vector_store %arg4[%c0_19, %c0_20], %30 {strides = array<i32>} : memref<64x128xf32, #tpu.memory_space<vmem>>, vector<64x128xf32>,
    return
  }
  func.func @transform_0(%arg0: i32) -> (i32, i32) {
    %c0_i32 = arith.constant 0 : i32
    %c0_i32_0 = arith.constant 0 : i32
    return %arg0, %c0_i32 : i32, i32
  }
  func.func @transform_1(%arg0: i32) -> (i32, i32, i32) {
    %c0_i32 = arith.constant 0 : i32
    %c0_i32_0 = arith.constant 0 : i32
    %c0_i32_1 = arith.constant 0 : i32
    %c0_i32_2 = arith.constant 0 : i32
    return %c0_i32, %c0_i32_0, %c0_i32_1 : i32, i32, i32
  }
  func.func @transform_2(%arg0: i32) -> (i32, i32) {
    %c0_i32 = arith.constant 0 : i32
    %c0_i32_0 = arith.constant 0 : i32
    %c0_i32_1 = arith.constant 0 : i32
    return %c0_i32, %c0_i32_0 : i32, i32
  }
  func.func @transform_3(%arg0: i32) -> (i32, i32) {
    %c0_i32 = arith.constant 0 : i32
    %c0_i32_0 = arith.constant 0 : i32
    return %arg0, %c0_i32 : i32, i32
  }
}

module attributes {stable_mosaic.version = 11 : i64} {
  func.func @kernel(%arg0: i32, %arg1: memref<64x128xbf16, #tpu.memory_space<vmem>>, %arg2: memref<3x128x128xbf16, #tpu.memory_space<vmem>>, %arg3: memref<3x128xf32, #tpu.memory_space<vmem>>, %arg4: memref<64x128xf32, #tpu.memory_space<vmem>>) attributes {dimension_semantics = [#tpu.dimension_semantics<parallel>], iteration_bounds = array<i64: 1>, scalar_prefetch = 0 : i64, scratch_operands = 0 : i64, tpu.core_type = #tpu.core_type<tc>, window_params = [{transform_indices = @transform_0, window_bounds = array<i64: 64, 128>}, {pipeline_mode = #tpu.pipeline_mode<synchronous>, transform_indices = @transform_1, window_bounds = array<i64: 3, 128, 128>}, {pipeline_mode = #tpu.pipeline_mode<synchronous>, transform_indices = @transform_2, window_bounds = array<i64: 3, 128>}, {transform_indices = @transform_3, window_bounds = array<i64: 64, 128>}]} {
    %c0 = arith.constant 0 : index
    %c0_0 = arith.constant 0 : index
    %0 = vector.load %arg1[%c0, %c0_0] : memref<64x128xbf16, #tpu.memory_space<vmem>>, vector<64x128xbf16>
    %1 = arith.extf %0 : vector<64x128xbf16> to vector<64x128xf32>
    %2 = arith.truncf %1 : vector<64x128xf32> to vector<64x128xbf16>
    %c0_1 = arith.constant 0 : index
    %c0_2 = arith.constant 0 : index
    %c0_3 = arith.constant 0 : index
    %3 = vector.load %arg2[%c0_1, %c0_2, %c0_3] : memref<3x128x128xbf16, #tpu.memory_space<vmem>>, vector<1x128x128xbf16>
    %4 = vector.shape_cast %3 : vector<1x128x128xbf16> to vector<128x128xbf16>
    %cst = arith.constant dense<0.000000e+00> : vector<64x128xf32>
    %5 = tpu.matmul %2, %4, %cst {dimension_numbers = #tpu.dot_dimension_numbers<[1], [0], [0], [1], [0, 0, 1, 1], [], []>} : vector<64x128xbf16>, vector<128x128xbf16>, vector<64x128xf32> -> vector<64x128xf32>
    %c0_4 = arith.constant 0 : index
    %c0_5 = arith.constant 0 : index
    %6 = vector.load %arg3[%c0_4, %c0_5] : memref<3x128xf32, #tpu.memory_space<vmem>>, vector<1x128xf32>
    %7 = vector.broadcast %6 : vector<1x128xf32> to vector<64x128xf32>
    %8 = arith.addf %5, %7 : vector<64x128xf32>
    %cst_6 = arith.constant 0.000000e+00 : f32
    %9 = vector.broadcast %cst_6 : f32 to vector<64x128xf32>
    %10 = arith.maximumf %8, %9 : vector<64x128xf32>
    %11 = arith.addf %1, %10 : vector<64x128xf32>
    %12 = arith.truncf %11 : vector<64x128xf32> to vector<64x128xbf16>
    %c1 = arith.constant 1 : index
    %c0_7 = arith.constant 0 : index
    %c0_8 = arith.constant 0 : index
    %13 = vector.load %arg2[%c1, %c0_7, %c0_8] : memref<3x128x128xbf16, #tpu.memory_space<vmem>>, vector<1x128x128xbf16>
    %14 = vector.shape_cast %13 : vector<1x128x128xbf16> to vector<128x128xbf16>
    %cst_9 = arith.constant dense<0.000000e+00> : vector<64x128xf32>
    %15 = tpu.matmul %12, %14, %cst_9 {dimension_numbers = #tpu.dot_dimension_numbers<[1], [0], [0], [1], [0, 0, 1, 1], [], []>} : vector<64x128xbf16>, vector<128x128xbf16>, vector<64x128xf32> -> vector<64x128xf32>
    %c1_10 = arith.constant 1 : index
    %c0_11 = arith.constant 0 : index
    %16 = vector.load %arg3[%c1_10, %c0_11] : memref<3x128xf32, #tpu.memory_space<vmem>>, vector<1x128xf32>
    %17 = vector.broadcast %16 : vector<1x128xf32> to vector<64x128xf32>
    %18 = arith.addf %15, %17 : vector<64x128xf32>
    %cst_12 = arith.constant 0.000000e+00 : f32
    %19 = vector.broadcast %cst_12 : f32 to vector<64x128xf32>
    %20 = arith.maximumf %18, %19 : vector<64x128xf32>
    %21 = arith.addf %11, %20 : vector<64x128xf32>
    %22 = arith.truncf %21 : vector<64x128xf32> to vector<64x128xbf16>
    %c2 = arith.constant 2 : index
    %c0_13 = arith.constant 0 : index
    %c0_14 = arith.constant 0 : index
    %23 = vector.load %arg2[%c2, %c0_13, %c0_14] : memref<3x128x128xbf16, #tpu.memory_space<vmem>>, vector<1x128x128xbf16>
    %24 = vector.shape_cast %23 : vector<1x128x128xbf16> to vector<128x128xbf16>
    %cst_15 = arith.constant dense<0.000000e+00> : vector<64x128xf32>
    %25 = tpu.matmul %22, %24, %cst_15 {dimension_numbers = #tpu.dot_dimension_numbers<[1], [0], [0], [1], [0, 0, 1, 1], [], []>} : vector<64x128xbf16>, vector<128x128xbf16>, vector<64x128xf32> -> vector<64x128xf32>
    %c2_16 = arith.constant 2 : index
    %c0_17 = arith.constant 0 : index
    %26 = vector.load %arg3[%c2_16, %c0_17] : memref<3x128xf32, #tpu.memory_space<vmem>>, vector<1x128xf32>
    %27 = vector.broadcast %26 : vector<1x128xf32> to vector<64x128xf32>
    %28 = arith.addf %25, %27 : vector<64x128xf32>
    %cst_18 = arith.constant 0.000000e+00 : f32
    %29 = vector.broadcast %cst_18 : f32 to vector<64x128xf32>
    %30 = arith.maximumf %28, %29 : vector<64x128xf32>
    %c0_19 = arith.constant 0 : index
    %c0_20 = arith.constant 0 : index
    %31 = vector.load %arg4[%c0_19, %c0_20] : memref<64x128xf32, #tpu.memory_space<vmem>>, vector<64x128xf32>
    tpu.vector_store %arg4[%c0_19, %c0_20], %30 {strides = array<i32>} : memref<64x128xf32, #tpu.memory_space<vmem>>, vector<64x128xf32>,
    return
  }
  func.func @transform_0(%arg0: i32) -> (i32, i32) {
    %c0_i32 = arith.constant 0 : i32
    %c0_i32_0 = arith.constant 0 : i32
    return %arg0, %c0_i32 : i32, i32
  }
  func.func @transform_1(%arg0: i32) -> (i32, i32, i32) {
    %c0_i32 = arith.constant 0 : i32
    %c0_i32_0 = arith.constant 0 : i32
    %c0_i32_1 = arith.constant 0 : i32
    %c0_i32_2 = arith.constant 0 : i32
    return %c0_i32, %c0_i32_0, %c0_i32_1 : i32, i32, i32
  }
  func.func @transform_2(%arg0: i32) -> (i32, i32) {
    %c0_i32 = arith.constant 0 : i32
    %c0_i32_0 = arith.constant 0 : i32
    %c0_i32_1 = arith.constant 0 : i32
    return %c0_i32, %c0_i32_0 : i32, i32
  }
  func.func @transform_3(%arg0: i32) -> (i32, i32) {
    %c0_i32 = arith.constant 0 : i32
    %c0_i32_0 = arith.constant 0 : i32
    return %arg0, %c0_i32 : i32, i32
  }
}

</mosaic_0001>

<llo_original>
// kernel: tpu_custom_call.1
$region0: #{tpu_custom_call.1}
  #allocation0 [shape = 'u32[]', space=smem, size = 0x4, offset = 0x4, fixed_abs, tag = 'smem constant byte address 0x4 - core index']
  #allocation1 [shape = 'u32[144,128]{1,0:T(1,128)}', space=vmem, size = 0x12000, scoped, tag = 'internal scratch']
  %s0 = inlined_call_operand.hbm [shape: bf16[64,128], index: 0, kind: input, shape index: {}]
  %s1 = inlined_call_operand.hbm [shape: bf16[3,128,128], index: 1, kind: input, shape index: {}]
  %s2 = inlined_call_operand.vmem [shape: f32[3,128], index: 2, kind: input, shape index: {}]
  %s3 = inlined_call_operand.hbm [shape: f32[64,128], index: 3, kind: output, shape index: {}]
  %s4 = sld [smem:[#allocation0]]
  $region30: #{tpu_custom_call.1} parent=0
    _
  %s6 = ssub.s32 1, %s4
  %s7 = scalar_select 0, %s6, %s4
  $region1: #{tpu_custom_call.1} parent=0
    #allocation2 [shape = 'u8[16384]{0}', space=vmem, size = 0x4000, scoped, tag = 'input window, operand 0, single buffered']
    #allocation3 [shape = 's32[1]{0}', space=sflag, size = 0x4, scoped, tag = 'scoped memory for tpu_custom_call.1']
    #allocation4 [shape = 's32[1]{0}', space=sflag, size = 0x4, scoped, tag = 'scoped memory for tpu_custom_call.1']
    #allocation5 [shape = 'u8[98304]{0}', space=vmem, size = 0x18000, scoped, tag = 'input window, operand 1, single buffered']
    #allocation6 [shape = 's32[1]{0}', space=sflag, size = 0x4, scoped, tag = 'scoped memory for tpu_custom_call.1']
    #allocation7 [shape = 'u8[32768]{0}', space=vmem, size = 0x8000, scoped, tag = 'output window, operand 0, single buffered']
    %8 = vsyncpa [#allocation3], 0
    %9 = vsyncpa [#allocation6], 0
    %10 = vsyncpa [#allocation4], 0
    // Predicated region
    $region2: #{tpu_custom_call.1} parent=1 // pred_check
      _
    $region3: #{tpu_custom_call.1} parent=1 // pred_check_branch
      %12 = sbr.rel (0) target = $region5
    $region4: #{tpu_custom_call.1} parent=1 // pred_region
      %s14 = ssub.s32 512, 512
      %15 = vsyncadd [#allocation3], %s14
      %s16 = sshll.u32 [#allocation2], 4
      %s17 = int_to_ptr.vmem [resolvable:$true] %s16
      %22 = dma.hbm_to_vmem [thread:$0]  %s0, 512, %s17, [#allocation3], 64, 64, 4
    $region5: #{tpu_custom_call.1} parent=1 // pred_fallthru
      _
    // Predicated region
    $region6: #{tpu_custom_call.1} parent=1 // pred_check
      _
    $region7: #{tpu_custom_call.1} parent=1 // pred_check_branch
      %24 = sbr.rel (0) target = $region9
    $region8: #{tpu_custom_call.1} parent=1 // pred_region
      %s26 = ssub.s32 3072, 3072
      %27 = vsyncadd [#allocation6], %s26
      %s28 = sshll.u32 [#allocation5], 4
      %s29 = int_to_ptr.vmem [resolvable:$true] %s28
      %34 = dma.hbm_to_vmem [thread:$0]  %s1, 3072, %s29, [#allocation6], 64, 64, 4
    $region9: #{tpu_custom_call.1} parent=1 // pred_fallthru
      _
    // Predicated region
    $region10: #{tpu_custom_call.1} parent=1 // pred_check
      _
    $region11: #{tpu_custom_call.1} parent=1 // pred_check_branch
      %36 = sbr.rel (0) target = $region13
    $region12: #{tpu_custom_call.1} parent=1 // pred_region
      _
    $region13: #{tpu_custom_call.1} parent=1 // pred_fallthru
      _
    // Predicated region
    $region14: #{tpu_custom_call.1} parent=1 // pred_check
      _
    $region15: #{tpu_custom_call.1} parent=1 // pred_check_branch
      %38 = sbr.rel (0) target = $region17
    $region16: #{tpu_custom_call.1} parent=1 // pred_region
      %39 = dma.done [#allocation3], 512
    $region17: #{tpu_custom_call.1} parent=1 // pred_fallthru
      _
    // Predicated region
    $region18: #{tpu_custom_call.1} parent=1 // pred_check
      _
    $region19: #{tpu_custom_call.1} parent=1 // pred_check_branch
      %41 = sbr.rel (0) target = $region21
    $region20: #{tpu_custom_call.1} parent=1 // pred_region
      %42 = dma.done [#allocation6], 3072
    $region21: #{tpu_custom_call.1} parent=1 // pred_fallthru
      _
    %v44 = vld [vmem:[#allocation2] sm:$0xf]
    %v45 = vld [vmem:[#allocation2 + $0x4] sm:$0xf]
    %v46 = vld [vmem:[#allocation2 + $0x8] sm:$0xf]
    %v47 = vld [vmem:[#allocation2 + $0xc] sm:$0xf]
    %v48 = vld [vmem:[#allocation2 + $0x10] sm:$0xf]
    %v49 = vld [vmem:[#allocation2 + $0x14] sm:$0xf]
    %v50 = vld [vmem:[#allocation2 + $0x18] sm:$0xf]
    %v51 = vld [vmem:[#allocation2 + $0x1c] sm:$0xf]
    %v52 = vunpack.c.l.bf16 %v44
    %v53 = vunpack.c.l.bf16 %v45
    %v54 = vunpack.c.l.bf16 %v46
    %v55 = vunpack.c.l.bf16 %v47
    %v56 = vunpack.c.l.bf16 %v48
    %v57 = vunpack.c.l.bf16 %v49
    %v58 = vunpack.c.l.bf16 %v50
    %v59 = vunpack.c.l.bf16 %v51
    %v60 = vld [vmem:[#allocation5] sm:$0xf]
    %v61 = vld [vmem:[#allocation5 + $0x4] sm:$0xf]
    %v62 = vld [vmem:[#allocation5 + $0x8] sm:$0xf]
    %v63 = vld [vmem:[#allocation5 + $0xc] sm:$0xf]
    %v64 = vld [vmem:[#allocation5 + $0x10] sm:$0xf]
    %v65 = vld [vmem:[#allocation5 + $0x14] sm:$0xf]
    %v66 = vld [vmem:[#allocation5 + $0x18] sm:$0xf]
    %v67 = vld [vmem:[#allocation5 + $0x1c] sm:$0xf]
    %v68 = vld [vmem:[#allocation5 + $0x20] sm:$0xf]
    %v69 = vld [vmem:[#allocation5 + $0x24] sm:$0xf]
    %v70 = vld [vmem:[#allocation5 + $0x28] sm:$0xf]
    %v71 = vld [vmem:[#allocation5 + $0x2c] sm:$0xf]
    %v72 = vld [vmem:[#allocation5 + $0x30] sm:$0xf]
    %v73 = vld [vmem:[#allocation5 + $0x34] sm:$0xf]
    %v74 = vld [vmem:[#allocation5 + $0x38] sm:$0xf]
    %v75 = vld [vmem:[#allocation5 + $0x3c] sm:$0xf]
    %v76 = vld [vmem:[%s2] sm:$0x1]
    %v77 = vlaneseq
    %v78 = vshrl.u32 %v77, 7
    %v79 = vsub.s32 0, %v78
    %v80 = vrot.slane %v76, %v79
    %v89 = vunpack.c.l.b16 %v44
    %v90 = vunpack.c.l.b16 %v45
    %v91 = vunpack.c.l.b16 %v46
    %v92 = vunpack.c.l.b16 %v47
    %v93 = vunpack.c.l.b16 %v48
    %v94 = vunpack.c.l.b16 %v49
    %v95 = vunpack.c.l.b16 %v50
    %v96 = vunpack.c.l.b16 %v51
    %v97 = vpack.c.b16 %v90, %v89
    %v98 = vpack.c.b16 %v92, %v91
    %v99 = vpack.c.b16 %v94, %v93
    %v100 = vpack.c.b16 %v96, %v95
    %v121 = vunpack.c.l.b16 %v60
    %v122 = vunpack.c.l.b16 %v61
    %v123 = vunpack.c.l.b16 %v62
    %v124 = vunpack.c.l.b16 %v63
    %v125 = vunpack.c.l.b16 %v64
    %v126 = vunpack.c.l.b16 %v65
    %v127 = vunpack.c.l.b16 %v66
    %v128 = vunpack.c.l.b16 %v67
    %v129 = vunpack.c.l.b16 %v68
    %v130 = vunpack.c.l.b16 %v69
    %v131 = vunpack.c.l.b16 %v70
    %v132 = vunpack.c.l.b16 %v71
    %v133 = vunpack.c.l.b16 %v72
    %v134 = vunpack.c.l.b16 %v73
    %v135 = vunpack.c.l.b16 %v74
    %v136 = vunpack.c.l.b16 %v75
    %v137 = vpack.c.b16 %v122, %v121
    %v138 = vpack.c.b16 %v124, %v123
    %v139 = vpack.c.b16 %v126, %v125
    %v140 = vpack.c.b16 %v128, %v127
    %v141 = vpack.c.b16 %v130, %v129
    %v142 = vpack.c.b16 %v132, %v131
    %v143 = vpack.c.b16 %v134, %v133
    %v144 = vpack.c.b16 %v136, %v135
    %153 = vmatprep.subr.bf16.mxu0 0
    %154 = vmatpush1.bf16.msra.mxu0 %v137
    %155 = vmatprep.subr.bf16.mxu0 0
    %156 = vmatpush1.bf16.msra.mxu0 %v138
    %157 = vmatprep.subr.bf16.mxu0 0
    %158 = vmatpush1.bf16.msra.mxu0 %v139
    %159 = vmatprep.subr.bf16.mxu0 0
    %160 = vmatpush1.bf16.msra.mxu0 %v140
    %161 = vmatprep.subr.bf16.mxu0 0
    %162 = vmatpush1.bf16.msra.mxu0 %v141
    %163 = vmatprep.subr.bf16.mxu0 0
    %164 = vmatpush1.bf16.msra.mxu0 %v142
    %165 = vmatprep.subr.bf16.mxu0 0
    %166 = vmatpush1.bf16.msra.mxu0 %v143
    %167 = vmatprep.subr.bf16.mxu0 0
    %168 = vmatpush1.bf16.msra.mxu0 %v144
    %169 = vmatprep.subr.bf16.mxu0 0
    %170 = vmatpush1.bf16.msra.mxu0 0
    %171 = vmatprep.subr.bf16.mxu0 0
    %172 = vmatpush1.bf16.msra.mxu0 0
    %173 = vmatprep.subr.bf16.mxu0 0
    %174 = vmatpush1.bf16.msra.mxu0 0
    %175 = vmatprep.subr.bf16.mxu0 0
    %176 = vmatpush1.bf16.msra.mxu0 0
    %177 = vmatprep.subr.bf16.mxu0 0
    %178 = vmatpush1.bf16.msra.mxu0 0
    %179 = vmatprep.subr.bf16.mxu0 0
    %180 = vmatpush1.bf16.msra.mxu0 0
    %181 = vmatprep.subr.bf16.mxu0 0
    %182 = vmatpush1.bf16.msra.mxu0 0
    %183 = vmatprep.subr.bf16.mxu0 0
    %184 = vmatpush1.bf16.msra.mxu0 0
    %185 = vmatprep.mubr.bf16.mxu0 0
    %186 = vmatmul.mubr.bf16.gmra.mrb[0].mxu0 %v97
    %v187 = vpop.f32.mrb[0].mxu0
    %v188 = vadd.f32 %v80, %v187
    %v189 = vpop.f32.mrb[0].mxu0
    %v190 = vpop.f32.mrb[0].mxu0
    %v191 = vadd.f32 %v80, %v190
    %v192 = vpop.f32.mrb[0].mxu0
    %193 = vmatprep.mubr.bf16.mxu0 0
    %194 = vmatmul.mubr.bf16.gmra.mrb[0].mxu0 %v98
    %v195 = vpop.f32.mrb[0].mxu0
    %v196 = vadd.f32 %v80, %v195
    %v197 = vpop.f32.mrb[0].mxu0
    %v198 = vpop.f32.mrb[0].mxu0
    %v199 = vadd.f32 %v80, %v198
    %v200 = vpop.f32.mrb[0].mxu0
    %201 = vmatprep.mubr.bf16.mxu0 0
    %202 = vmatmul.mubr.bf16.gmra.mrb[0].mxu0 %v99
    %v203 = vpop.f32.mrb[0].mxu0
    %v204 = vadd.f32 %v80, %v203
    %v205 = vpop.f32.mrb[0].mxu0
    %v206 = vpop.f32.mrb[0].mxu0
    %v207 = vadd.f32 %v80, %v206
    %v208 = vpop.f32.mrb[0].mxu0
    %209 = vmatprep.mubr.bf16.mxu0 0
    %210 = vmatmul.mubr.bf16.gmra.mrb[0].mxu0 %v100
    %v211 = vpop.f32.mrb[0].mxu0
    %v212 = vadd.f32 %v80, %v211
    %v213 = vpop.f32.mrb[0].mxu0
    %v214 = vpop.f32.mrb[0].mxu0
    %v215 = vadd.f32 %v80, %v214
    %v216 = vpop.f32.mrb[0].mxu0
    %217 = vdwg.mxu0
    %v218 = vmax.f32 %v188, 0.0
    %v219 = vmax.f32 %v191, 0.0
    %v220 = vmax.f32 %v196, 0.0
    %v221 = vmax.f32 %v199, 0.0
    %v222 = vmax.f32 %v204, 0.0
    %v223 = vmax.f32 %v207, 0.0
    %v224 = vmax.f32 %v212, 0.0
    %v225 = vmax.f32 %v215, 0.0
    %v226 = vadd.f32 %v52, %v218
    %v227 = vadd.f32 %v53, %v219
    %v228 = vadd.f32 %v54, %v220
    %v229 = vadd.f32 %v55, %v221
    %v230 = vadd.f32 %v56, %v222
    %v231 = vadd.f32 %v57, %v223
    %v232 = vadd.f32 %v58, %v224
    %v233 = vadd.f32 %v59, %v225
    %v234 = vpack.c.bf16 %v227, %v226
    %v235 = vpack.c.bf16 %v229, %v228
    %v236 = vpack.c.bf16 %v231, %v230
    %v237 = vpack.c.bf16 %v233, %v232
    %s238 = scalar_lea.vmem [#allocation5], 64
    %v239 = vld [vmem:[%s238] sm:$0xf]
    %v240 = vld [vmem:[%s238 + $0x4] sm:$0xf]
    %v241 = vld [vmem:[%s238 + $0x8] sm:$0xf]
    %v242 = vld [vmem:[%s238 + $0xc] sm:$0xf]
    %v243 = vld [vmem:[%s238 + $0x10] sm:$0xf]
    %v244 = vld [vmem:[%s238 + $0x14] sm:$0xf]
    %v245 = vld [vmem:[%s238 + $0x18] sm:$0xf]
    %v246 = vld [vmem:[%s238 + $0x1c] sm:$0xf]
    %v247 = vld [vmem:[%s238 + $0x20] sm:$0xf]
    %v248 = vld [vmem:[%s238 + $0x24] sm:$0xf]
    %v249 = vld [vmem:[%s238 + $0x28] sm:$0xf]
    %v250 = vld [vmem:[%s238 + $0x2c] sm:$0xf]
    %v251 = vld [vmem:[%s238 + $0x30] sm:$0xf]
    %v252 = vld [vmem:[%s238 + $0x34] sm:$0xf]
    %v253 = vld [vmem:[%s238 + $0x38] sm:$0xf]
    %v254 = vld [vmem:[%s238 + $0x3c] sm:$0xf]
    %v255 = vld [vmem:[%s2 + $0x1] sm:$0x1]
    %v256 = vlaneseq
    %v257 = vshrl.u32 %v256, 7
    %v258 = vsub.s32 0, %v257
    %v259 = vrot.slane %v255, %v258
    %v276 = vunpack.c.l.b16 %v239
    %v277 = vunpack.c.l.b16 %v240
    %v278 = vunpack.c.l.b16 %v241
    %v279 = vunpack.c.l.b16 %v242
    %v280 = vunpack.c.l.b16 %v243
    %v281 = vunpack.c.l.b16 %v244
    %v282 = vunpack.c.l.b16 %v245
    %v283 = vunpack.c.l.b16 %v246
    %v284 = vunpack.c.l.b16 %v247
    %v285 = vunpack.c.l.b16 %v248
    %v286 = vunpack.c.l.b16 %v249
    %v287 = vunpack.c.l.b16 %v250
    %v288 = vunpack.c.l.b16 %v251
    %v289 = vunpack.c.l.b16 %v252
    %v290 = vunpack.c.l.b16 %v253
    %v291 = vunpack.c.l.b16 %v254
    %v292 = vpack.c.b16 %v277, %v276
    %v293 = vpack.c.b16 %v279, %v278
    %v294 = vpack.c.b16 %v281, %v280
    %v295 = vpack.c.b16 %v283, %v282
    %v296 = vpack.c.b16 %v285, %v284
    %v297 = vpack.c.b16 %v287, %v286
    %v298 = vpack.c.b16 %v289, %v288
    %v299 = vpack.c.b16 %v291, %v290
    %308 = vmatprep.subr.bf16.mxu0 0
    %309 = vmatpush1.bf16.msra.mxu0 %v292
    %310 = vmatprep.subr.bf16.mxu0 0
    %311 = vmatpush1.bf16.msra.mxu0 %v293
    %312 = vmatprep.subr.bf16.mxu0 0
    %313 = vmatpush1.bf16.msra.mxu0 %v294
    %314 = vmatprep.subr.bf16.mxu0 0
    %315 = vmatpush1.bf16.msra.mxu0 %v295
    %316 = vmatprep.subr.bf16.mxu0 0
    %317 = vmatpush1.bf16.msra.mxu0 %v296
    %318 = vmatprep.subr.bf16.mxu0 0
    %319 = vmatpush1.bf16.msra.mxu0 %v297
    %320 = vmatprep.subr.bf16.mxu0 0
    %321 = vmatpush1.bf16.msra.mxu0 %v298
    %322 = vmatprep.subr.bf16.mxu0 0
    %323 = vmatpush1.bf16.msra.mxu0 %v299
    %324 = vmatprep.subr.bf16.mxu0 0
    %325 = vmatpush1.bf16.msra.mxu0 0
    %326 = vmatprep.subr.bf16.mxu0 0
    %327 = vmatpush1.bf16.msra.mxu0 0
    %328 = vmatprep.subr.bf16.mxu0 0
    %329 = vmatpush1.bf16.msra.mxu0 0
    %330 = vmatprep.subr.bf16.mxu0 0
    %331 = vmatpush1.bf16.msra.mxu0 0
    %332 = vmatprep.subr.bf16.mxu0 0
    %333 = vmatpush1.bf16.msra.mxu0 0
    %334 = vmatprep.subr.bf16.mxu0 0
    %335 = vmatpush1.bf16.msra.mxu0 0
    %336 = vmatprep.subr.bf16.mxu0 0
    %337 = vmatpush1.bf16.msra.mxu0 0
    %338 = vmatprep.subr.bf16.mxu0 0
    %339 = vmatpush1.bf16.msra.mxu0 0
    %340 = vmatprep.mubr.bf16.mxu0 0
    %341 = vmatmul.mubr.bf16.gmra.mrb[0].mxu0 %v234
    %v342 = vpop.f32.mrb[0].mxu0
    %v343 = vadd.f32 %v259, %v342
    %v344 = vpop.f32.mrb[0].mxu0
    %v345 = vpop.f32.mrb[0].mxu0
    %v346 = vadd.f32 %v259, %v345
    %v347 = vpop.f32.mrb[0].mxu0
    %348 = vmatprep.mubr.bf16.mxu0 0
    %349 = vmatmul.mubr.bf16.gmra.mrb[0].mxu0 %v235
    %v350 = vpop.f32.mrb[0].mxu0
    %v351 = vadd.f32 %v259, %v350
    %v352 = vpop.f32.mrb[0].mxu0
    %v353 = vpop.f32.mrb[0].mxu0
    %v354 = vadd.f32 %v259, %v353
    %v355 = vpop.f32.mrb[0].mxu0
    %356 = vmatprep.mubr.bf16.mxu0 0
    %357 = vmatmul.mubr.bf16.gmra.mrb[0].mxu0 %v236
    %v358 = vpop.f32.mrb[0].mxu0
    %v359 = vadd.f32 %v259, %v358
    %v360 = vpop.f32.mrb[0].mxu0
    %v361 = vpop.f32.mrb[0].mxu0
    %v362 = vadd.f32 %v259, %v361
    %v363 = vpop.f32.mrb[0].mxu0
    %364 = vmatprep.mubr.bf16.mxu0 0
    %365 = vmatmul.mubr.bf16.gmra.mrb[0].mxu0 %v237
    %v366 = vpop.f32.mrb[0].mxu0
    %v367 = vadd.f32 %v259, %v366
    %v368 = vpop.f32.mrb[0].mxu0
    %v369 = vpop.f32.mrb[0].mxu0
    %v370 = vadd.f32 %v259, %v369
    %v371 = vpop.f32.mrb[0].mxu0
    %372 = vdwg.mxu0
    %v373 = vmax.f32 %v343, 0.0
    %v374 = vmax.f32 %v346, 0.0
    %v375 = vmax.f32 %v351, 0.0
    %v376 = vmax.f32 %v354, 0.0
    %v377 = vmax.f32 %v359, 0.0
    %v378 = vmax.f32 %v362, 0.0
    %v379 = vmax.f32 %v367, 0.0
    %v380 = vmax.f32 %v370, 0.0
    %v381 = vadd.f32 %v226, %v373
    %v382 = vadd.f32 %v227, %v374
    %v383 = vadd.f32 %v228, %v375
    %v384 = vadd.f32 %v229, %v376
    %v385 = vadd.f32 %v230, %v377
    %v386 = vadd.f32 %v231, %v378
    %v387 = vadd.f32 %v232, %v379
    %v388 = vadd.f32 %v233, %v380
    %v389 = vpack.c.bf16 %v382, %v381
    %v390 = vpack.c.bf16 %v384, %v383
    %v391 = vpack.c.bf16 %v386, %v385
    %v392 = vpack.c.bf16 %v388, %v387
    %s393 = scalar_lea.vmem [#allocation5], 128
    %v394 = vld [vmem:[%s393] sm:$0xf]
    %v395 = vld [vmem:[%s393 + $0x4] sm:$0xf]
    %v396 = vld [vmem:[%s393 + $0x8] sm:$0xf]
    %v397 = vld [vmem:[%s393 + $0xc] sm:$0xf]
    %v398 = vld [vmem:[%s393 + $0x10] sm:$0xf]
    %v399 = vld [vmem:[%s393 + $0x14] sm:$0xf]
    %v400 = vld [vmem:[%s393 + $0x18] sm:$0xf]
    %v401 = vld [vmem:[%s393 + $0x1c] sm:$0xf]
    %v402 = vld [vmem:[%s393 + $0x20] sm:$0xf]
    %v403 = vld [vmem:[%s393 + $0x24] sm:$0xf]
    %v404 = vld [vmem:[%s393 + $0x28] sm:$0xf]
    %v405 = vld [vmem:[%s393 + $0x2c] sm:$0xf]
    %v406 = vld [vmem:[%s393 + $0x30] sm:$0xf]
    %v407 = vld [vmem:[%s393 + $0x34] sm:$0xf]
    %v408 = vld [vmem:[%s393 + $0x38] sm:$0xf]
    %v409 = vld [vmem:[%s393 + $0x3c] sm:$0xf]
    %v410 = vld [vmem:[%s2 + $0x2] sm:$0x1]
    %v411 = vlaneseq
    %v412 = vshrl.u32 %v411, 7
    %v413 = vsub.s32 0, %v412
    %v414 = vrot.slane %v410, %v413
    %v431 = vunpack.c.l.b16 %v394
    %v432 = vunpack.c.l.b16 %v395
    %v433 = vunpack.c.l.b16 %v396
    %v434 = vunpack.c.l.b16 %v397
    %v435 = vunpack.c.l.b16 %v398
    %v436 = vunpack.c.l.b16 %v399
    %v437 = vunpack.c.l.b16 %v400
    %v438 = vunpack.c.l.b16 %v401
    %v439 = vunpack.c.l.b16 %v402
    %v440 = vunpack.c.l.b16 %v403
    %v441 = vunpack.c.l.b16 %v404
    %v442 = vunpack.c.l.b16 %v405
    %v443 = vunpack.c.l.b16 %v406
    %v444 = vunpack.c.l.b16 %v407
    %v445 = vunpack.c.l.b16 %v408
    %v446 = vunpack.c.l.b16 %v409
    %v447 = vpack.c.b16 %v432, %v431
    %v448 = vpack.c.b16 %v434, %v433
    %v449 = vpack.c.b16 %v436, %v435
    %v450 = vpack.c.b16 %v438, %v437
    %v451 = vpack.c.b16 %v440, %v439
    %v452 = vpack.c.b16 %v442, %v441
    %v453 = vpack.c.b16 %v444, %v443
    %v454 = vpack.c.b16 %v446, %v445
    %463 = vmatprep.subr.bf16.mxu0 0
    %464 = vmatpush1.bf16.msra.mxu0 %v447
    %465 = vmatprep.subr.bf16.mxu0 0
    %466 = vmatpush1.bf16.msra.mxu0 %v448
    %467 = vmatprep.subr.bf16.mxu0 0
    %468 = vmatpush1.bf16.msra.mxu0 %v449
    %469 = vmatprep.subr.bf16.mxu0 0
    %470 = vmatpush1.bf16.msra.mxu0 %v450
    %471 = vmatprep.subr.bf16.mxu0 0
    %472 = vmatpush1.bf16.msra.mxu0 %v451
    %473 = vmatprep.subr.bf16.mxu0 0
    %474 = vmatpush1.bf16.msra.mxu0 %v452
    %475 = vmatprep.subr.bf16.mxu0 0
    %476 = vmatpush1.bf16.msra.mxu0 %v453
    %477 = vmatprep.subr.bf16.mxu0 0
    %478 = vmatpush1.bf16.msra.mxu0 %v454
    %479 = vmatprep.subr.bf16.mxu0 0
    %480 = vmatpush1.bf16.msra.mxu0 0
    %481 = vmatprep.subr.bf16.mxu0 0
    %482 = vmatpush1.bf16.msra.mxu0 0
    %483 = vmatprep.subr.bf16.mxu0 0
    %484 = vmatpush1.bf16.msra.mxu0 0
    %485 = vmatprep.subr.bf16.mxu0 0
    %486 = vmatpush1.bf16.msra.mxu0 0
    %487 = vmatprep.subr.bf16.mxu0 0
    %488 = vmatpush1.bf16.msra.mxu0 0
    %489 = vmatprep.subr.bf16.mxu0 0
    %490 = vmatpush1.bf16.msra.mxu0 0
    %491 = vmatprep.subr.bf16.mxu0 0
    %492 = vmatpush1.bf16.msra.mxu0 0
    %493 = vmatprep.subr.bf16.mxu0 0
    %494 = vmatpush1.bf16.msra.mxu0 0
    %495 = vmatprep.mubr.bf16.mxu0 0
    %496 = vmatmul.mubr.bf16.gmra.mrb[0].mxu0 %v389
    %v497 = vpop.f32.mrb[0].mxu0
    %v498 = vadd.f32 %v414, %v497
    %v499 = vpop.f32.mrb[0].mxu0
    %v500 = vpop.f32.mrb[0].mxu0
    %v501 = vadd.f32 %v414, %v500
    %v502 = vpop.f32.mrb[0].mxu0
    %503 = vmatprep.mubr.bf16.mxu0 0
    %504 = vmatmul.mubr.bf16.gmra.mrb[0].mxu0 %v390
    %v505 = vpop.f32.mrb[0].mxu0
    %v506 = vadd.f32 %v414, %v505
    %v507 = vpop.f32.mrb[0].mxu0
    %v508 = vpop.f32.mrb[0].mxu0
    %v509 = vadd.f32 %v414, %v508
    %v510 = vpop.f32.mrb[0].mxu0
    %511 = vmatprep.mubr.bf16.mxu0 0
    %512 = vmatmul.mubr.bf16.gmra.mrb[0].mxu0 %v391
    %v513 = vpop.f32.mrb[0].mxu0
    %v514 = vadd.f32 %v414, %v513
    %v515 = vpop.f32.mrb[0].mxu0
    %v516 = vpop.f32.mrb[0].mxu0
    %v517 = vadd.f32 %v414, %v516
    %v518 = vpop.f32.mrb[0].mxu0
    %519 = vmatprep.mubr.bf16.mxu0 0
    %520 = vmatmul.mubr.bf16.gmra.mrb[0].mxu0 %v392
    %v521 = vpop.f32.mrb[0].mxu0
    %v522 = vadd.f32 %v414, %v521
    %v523 = vpop.f32.mrb[0].mxu0
    %v524 = vpop.f32.mrb[0].mxu0
    %v525 = vadd.f32 %v414, %v524
    %v526 = vpop.f32.mrb[0].mxu0
    %527 = vdwg.mxu0
    %v528 = vmax.f32 %v498, 0.0
    %v529 = vmax.f32 %v501, 0.0
    %v530 = vmax.f32 %v506, 0.0
    %v531 = vmax.f32 %v509, 0.0
    %v532 = vmax.f32 %v514, 0.0
    %v533 = vmax.f32 %v517, 0.0
    %v534 = vmax.f32 %v522, 0.0
    %v535 = vmax.f32 %v525, 0.0
    %536 = vst [vmem:[#allocation7] sm:$0xff] %v528
    %537 = vst [vmem:[#allocation7 + $0x8] sm:$0xff] %v529
    %538 = vst [vmem:[#allocation7 + $0x10] sm:$0xff] %v530
    %539 = vst [vmem:[#allocation7 + $0x18] sm:$0xff] %v531
    %540 = vst [vmem:[#allocation7 + $0x20] sm:$0xff] %v532
    %541 = vst [vmem:[#allocation7 + $0x28] sm:$0xff] %v533
    %542 = vst [vmem:[#allocation7 + $0x30] sm:$0xff] %v534
    %543 = vst [vmem:[#allocation7 + $0x38] sm:$0xff] %v535
    // Predicated region
    $region22: #{tpu_custom_call.1} parent=1 // pred_check
      _
    $region23: #{tpu_custom_call.1} parent=1 // pred_check_branch
      %545 = sbr.rel (0) target = $region25
    $region24: #{tpu_custom_call.1} parent=1 // pred_region
      %s547 = ssub.s32 1024, 1024
      %548 = vsyncadd [#allocation4], %s547
      %s549 = sshll.u32 [#allocation7], 4
      %s550 = int_to_ptr.vmem [resolvable:$true] %s549
      %555 = dma.vmem_to_hbm [thread:$0]  %s550, 1024, %s3, [#allocation4], 128, 128, 8
    $region25: #{tpu_custom_call.1} parent=1 // pred_fallthru
      _
    // Predicated region
    $region26: #{tpu_custom_call.1} parent=1 // pred_check
      _
    $region27: #{tpu_custom_call.1} parent=1 // pred_check_branch
      %557 = sbr.rel (0) target = $region29
    $region28: #{tpu_custom_call.1} parent=1 // pred_region
      %558 = dma.done [#allocation4], 1024
    $region29: #{tpu_custom_call.1} parent=1 // pred_fallthru
      _
    %559 = vsyncpa [#allocation3], 1
    %560 = vsyncpa [#allocation6], 1
    %561 = vsyncpa [#allocation4], 1

// kernel: tpu_custom_call.1
$region0: #{tpu_custom_call.1}
  #allocation0 [shape = 'u32[]', space=smem, size = 0x4, offset = 0x4, fixed_abs, tag = 'smem constant byte address 0x4 - core index']
  #allocation1 [shape = 'u32[144,128]{1,0:T(1,128)}', space=vmem, size = 0x12000, scoped, tag = 'internal scratch']
  %s0 = inlined_call_operand.hbm [shape: bf16[64,128], index: 0, kind: input, shape index: {}]
  %s1 = inlined_call_operand.hbm [shape: bf16[3,128,128], index: 1, kind: input, shape index: {}]
  %s2 = inlined_call_operand.vmem [shape: f32[3,128], index: 2, kind: input, shape index: {}]
  %s3 = inlined_call_operand.hbm [shape: f32[64,128], index: 3, kind: output, shape index: {}]
  %s4 = sld [smem:[#allocation0]]
  $region30: #{tpu_custom_call.1} parent=0
    _
  %s6 = ssub.s32 1, %s4
  %s7 = scalar_select 0, %s6, %s4
  $region1: #{tpu_custom_call.1} parent=0
    #allocation2 [shape = 'u8[16384]{0}', space=vmem, size = 0x4000, scoped, tag = 'input window, operand 0, single buffered']
    #allocation3 [shape = 's32[1]{0}', space=sflag, size = 0x4, scoped, tag = 'scoped memory for tpu_custom_call.1']
    #allocation4 [shape = 's32[1]{0}', space=sflag, size = 0x4, scoped, tag = 'scoped memory for tpu_custom_call.1']
    #allocation5 [shape = 'u8[98304]{0}', space=vmem, size = 0x18000, scoped, tag = 'input window, operand 1, single buffered']
    #allocation6 [shape = 's32[1]{0}', space=sflag, size = 0x4, scoped, tag = 'scoped memory for tpu_custom_call.1']
    #allocation7 [shape = 'u8[32768]{0}', space=vmem, size = 0x8000, scoped, tag = 'output window, operand 0, single buffered']
    %8 = vsyncpa [#allocation3], 0
    %9 = vsyncpa [#allocation6], 0
    %10 = vsyncpa [#allocation4], 0
    // Predicated region
    $region2: #{tpu_custom_call.1} parent=1 // pred_check
      _
    $region3: #{tpu_custom_call.1} parent=1 // pred_check_branch
      %12 = sbr.rel (0) target = $region5
    $region4: #{tpu_custom_call.1} parent=1 // pred_region
      %s14 = ssub.s32 512, 512
      %15 = vsyncadd [#allocation3], %s14
      %s16 = sshll.u32 [#allocation2], 4
      %s17 = int_to_ptr.vmem [resolvable:$true] %s16
      %22 = dma.hbm_to_vmem [thread:$0]  %s0, 512, %s17, [#allocation3], 64, 64, 4
    $region5: #{tpu_custom_call.1} parent=1 // pred_fallthru
      _
    // Predicated region
    $region6: #{tpu_custom_call.1} parent=1 // pred_check
      _
    $region7: #{tpu_custom_call.1} parent=1 // pred_check_branch
      %24 = sbr.rel (0) target = $region9
    $region8: #{tpu_custom_call.1} parent=1 // pred_region
      %s26 = ssub.s32 3072, 3072
      %27 = vsyncadd [#allocation6], %s26
      %s28 = sshll.u32 [#allocation5], 4
      %s29 = int_to_ptr.vmem [resolvable:$true] %s28
      %34 = dma.hbm_to_vmem [thread:$0]  %s1, 3072, %s29, [#allocation6], 64, 64, 4
    $region9: #{tpu_custom_call.1} parent=1 // pred_fallthru
      _
    // Predicated region
    $region10: #{tpu_custom_call.1} parent=1 // pred_check
      _
    $region11: #{tpu_custom_call.1} parent=1 // pred_check_branch
      %36 = sbr.rel (0) target = $region13
    $region12: #{tpu_custom_call.1} parent=1 // pred_region
      _
    $region13: #{tpu_custom_call.1} parent=1 // pred_fallthru
      _
    // Predicated region
    $region14: #{tpu_custom_call.1} parent=1 // pred_check
      _
    $region15: #{tpu_custom_call.1} parent=1 // pred_check_branch
      %38 = sbr.rel (0) target = $region17
    $region16: #{tpu_custom_call.1} parent=1 // pred_region
      %39 = dma.done [#allocation3], 512
    $region17: #{tpu_custom_call.1} parent=1 // pred_fallthru
      _
    // Predicated region
    $region18: #{tpu_custom_call.1} parent=1 // pred_check
      _
    $region19: #{tpu_custom_call.1} parent=1 // pred_check_branch
      %41 = sbr.rel (0) target = $region21
    $region20: #{tpu_custom_call.1} parent=1 // pred_region
      %42 = dma.done [#allocation6], 3072
    $region21: #{tpu_custom_call.1} parent=1 // pred_fallthru
      _
    %v44 = vld [vmem:[#allocation2] sm:$0xf]
    %v45 = vld [vmem:[#allocation2 + $0x4] sm:$0xf]
    %v46 = vld [vmem:[#allocation2 + $0x8] sm:$0xf]
    %v47 = vld [vmem:[#allocation2 + $0xc] sm:$0xf]
    %v48 = vld [vmem:[#allocation2 + $0x10] sm:$0xf]
    %v49 = vld [vmem:[#allocation2 + $0x14] sm:$0xf]
    %v50 = vld [vmem:[#allocation2 + $0x18] sm:$0xf]
    %v51 = vld [vmem:[#allocation2 + $0x1c] sm:$0xf]
    %v52 = vunpack.c.l.bf16 %v44
    %v53 = vunpack.c.l.bf16 %v45
    %v54 = vunpack.c.l.bf16 %v46
    %v55 = vunpack.c.l.bf16 %v47
    %v56 = vunpack.c.l.bf16 %v48
    %v57 = vunpack.c.l.bf16 %v49
    %v58 = vunpack.c.l.bf16 %v50
    %v59 = vunpack.c.l.bf16 %v51
    %v60 = vld [vmem:[#allocation5] sm:$0xf]
    %v61 = vld [vmem:[#allocation5 + $0x4] sm:$0xf]
    %v62 = vld [vmem:[#allocation5 + $0x8] sm:$0xf]
    %v63 = vld [vmem:[#allocation5 + $0xc] sm:$0xf]
    %v64 = vld [vmem:[#allocation5 + $0x10] sm:$0xf]
    %v65 = vld [vmem:[#allocation5 + $0x14] sm:$0xf]
    %v66 = vld [vmem:[#allocation5 + $0x18] sm:$0xf]
    %v67 = vld [vmem:[#allocation5 + $0x1c] sm:$0xf]
    %v68 = vld [vmem:[#allocation5 + $0x20] sm:$0xf]
    %v69 = vld [vmem:[#allocation5 + $0x24] sm:$0xf]
    %v70 = vld [vmem:[#allocation5 + $0x28] sm:$0xf]
    %v71 = vld [vmem:[#allocation5 + $0x2c] sm:$0xf]
    %v72 = vld [vmem:[#allocation5 + $0x30] sm:$0xf]
    %v73 = vld [vmem:[#allocation5 + $0x34] sm:$0xf]
    %v74 = vld [vmem:[#allocation5 + $0x38] sm:$0xf]
    %v75 = vld [vmem:[#allocation5 + $0x3c] sm:$0xf]
    %v76 = vld [vmem:[%s2] sm:$0x1]
    %v77 = vlaneseq
    %v78 = vshrl.u32 %v77, 7
    %v79 = vsub.s32 0, %v78
    %v80 = vrot.slane %v76, %v79
    %v89 = vunpack.c.l.b16 %v44
    %v90 = vunpack.c.l.b16 %v45
    %v91 = vunpack.c.l.b16 %v46
    %v92 = vunpack.c.l.b16 %v47
    %v93 = vunpack.c.l.b16 %v48
    %v94 = vunpack.c.l.b16 %v49
    %v95 = vunpack.c.l.b16 %v50
    %v96 = vunpack.c.l.b16 %v51
    %v97 = vpack.c.b16 %v90, %v89
    %v98 = vpack.c.b16 %v92, %v91
    %v99 = vpack.c.b16 %v94, %v93
    %v100 = vpack.c.b16 %v96, %v95
    %v121 = vunpack.c.l.b16 %v60
    %v122 = vunpack.c.l.b16 %v61
    %v123 = vunpack.c.l.b16 %v62
    %v124 = vunpack.c.l.b16 %v63
    %v125 = vunpack.c.l.b16 %v64
    %v126 = vunpack.c.l.b16 %v65
    %v127 = vunpack.c.l.b16 %v66
    %v128 = vunpack.c.l.b16 %v67
    %v129 = vunpack.c.l.b16 %v68
    %v130 = vunpack.c.l.b16 %v69
    %v131 = vunpack.c.l.b16 %v70
    %v132 = vunpack.c.l.b16 %v71
    %v133 = vunpack.c.l.b16 %v72
    %v134 = vunpack.c.l.b16 %v73
    %v135 = vunpack.c.l.b16 %v74
    %v136 = vunpack.c.l.b16 %v75
    %v137 = vpack.c.b16 %v122, %v121
    %v138 = vpack.c.b16 %v124, %v123
    %v139 = vpack.c.b16 %v126, %v125
    %v140 = vpack.c.b16 %v128, %v127
    %v141 = vpack.c.b16 %v130, %v129
    %v142 = vpack.c.b16 %v132, %v131
    %v143 = vpack.c.b16 %v134, %v133
    %v144 = vpack.c.b16 %v136, %v135
    %153 = vmatprep.subr.bf16.mxu0 0
    %154 = vmatpush1.bf16.msra.mxu0 %v137
    %155 = vmatprep.subr.bf16.mxu0 0
    %156 = vmatpush1.bf16.msra.mxu0 %v138
    %157 = vmatprep.subr.bf16.mxu0 0
    %158 = vmatpush1.bf16.msra.mxu0 %v139
    %159 = vmatprep.subr.bf16.mxu0 0
    %160 = vmatpush1.bf16.msra.mxu0 %v140
    %161 = vmatprep.subr.bf16.mxu0 0
    %162 = vmatpush1.bf16.msra.mxu0 %v141
    %163 = vmatprep.subr.bf16.mxu0 0
    %164 = vmatpush1.bf16.msra.mxu0 %v142
    %165 = vmatprep.subr.bf16.mxu0 0
    %166 = vmatpush1.bf16.msra.mxu0 %v143
    %167 = vmatprep.subr.bf16.mxu0 0
    %168 = vmatpush1.bf16.msra.mxu0 %v144
    %169 = vmatprep.subr.bf16.mxu0 0
    %170 = vmatpush1.bf16.msra.mxu0 0
    %171 = vmatprep.subr.bf16.mxu0 0
    %172 = vmatpush1.bf16.msra.mxu0 0
    %173 = vmatprep.subr.bf16.mxu0 0
    %174 = vmatpush1.bf16.msra.mxu0 0
    %175 = vmatprep.subr.bf16.mxu0 0
    %176 = vmatpush1.bf16.msra.mxu0 0
    %177 = vmatprep.subr.bf16.mxu0 0
    %178 = vmatpush1.bf16.msra.mxu0 0
    %179 = vmatprep.subr.bf16.mxu0 0
    %180 = vmatpush1.bf16.msra.mxu0 0
    %181 = vmatprep.subr.bf16.mxu0 0
    %182 = vmatpush1.bf16.msra.mxu0 0
    %183 = vmatprep.subr.bf16.mxu0 0
    %184 = vmatpush1.bf16.msra.mxu0 0
    %185 = vmatprep.mubr.bf16.mxu0 0
    %186 = vmatmul.mubr.bf16.gmra.mrb[0].mxu0 %v97
    %v187 = vpop.f32.mrb[0].mxu0
    %v188 = vadd.f32 %v80, %v187
    %v189 = vpop.f32.mrb[0].mxu0
    %v190 = vpop.f32.mrb[0].mxu0
    %v191 = vadd.f32 %v80, %v190
    %v192 = vpop.f32.mrb[0].mxu0
    %193 = vmatprep.mubr.bf16.mxu0 0
    %194 = vmatmul.mubr.bf16.gmra.mrb[0].mxu0 %v98
    %v195 = vpop.f32.mrb[0].mxu0
    %v196 = vadd.f32 %v80, %v195
    %v197 = vpop.f32.mrb[0].mxu0
    %v198 = vpop.f32.mrb[0].mxu0
    %v199 = vadd.f32 %v80, %v198
    %v200 = vpop.f32.mrb[0].mxu0
    %201 = vmatprep.mubr.bf16.mxu0 0
    %202 = vmatmul.mubr.bf16.gmra.mrb[0].mxu0 %v99
    %v203 = vpop.f32.mrb[0].mxu0
    %v204 = vadd.f32 %v80, %v203
    %v205 = vpop.f32.mrb[0].mxu0
    %v206 = vpop.f32.mrb[0].mxu0
    %v207 = vadd.f32 %v80, %v206
    %v208 = vpop.f32.mrb[0].mxu0
    %209 = vmatprep.mubr.bf16.mxu0 0
    %210 = vmatmul.mubr.bf16.gmra.mrb[0].mxu0 %v100
    %v211 = vpop.f32.mrb[0].mxu0
    %v212 = vadd.f32 %v80, %v211
    %v213 = vpop.f32.mrb[0].mxu0
    %v214 = vpop.f32.mrb[0].mxu0
    %v215 = vadd.f32 %v80, %v214
    %v216 = vpop.f32.mrb[0].mxu0
    %217 = vdwg.mxu0
    %v218 = vmax.f32 %v188, 0.0
    %v219 = vmax.f32 %v191, 0.0
    %v220 = vmax.f32 %v196, 0.0
    %v221 = vmax.f32 %v199, 0.0
    %v222 = vmax.f32 %v204, 0.0
    %v223 = vmax.f32 %v207, 0.0
    %v224 = vmax.f32 %v212, 0.0
    %v225 = vmax.f32 %v215, 0.0
    %v226 = vadd.f32 %v52, %v218
    %v227 = vadd.f32 %v53, %v219
    %v228 = vadd.f32 %v54, %v220
    %v229 = vadd.f32 %v55, %v221
    %v230 = vadd.f32 %v56, %v222
    %v231 = vadd.f32 %v57, %v223
    %v232 = vadd.f32 %v58, %v224
    %v233 = vadd.f32 %v59, %v225
    %v234 = vpack.c.bf16 %v227, %v226
    %v235 = vpack.c.bf16 %v229, %v228
    %v236 = vpack.c.bf16 %v231, %v230
    %v237 = vpack.c.bf16 %v233, %v232
    %s238 = scalar_lea.vmem [#allocation5], 64
    %v239 = vld [vmem:[%s238] sm:$0xf]
    %v240 = vld [vmem:[%s238 + $0x4] sm:$0xf]
    %v241 = vld [vmem:[%s238 + $0x8] sm:$0xf]
    %v242 = vld [vmem:[%s238 + $0xc] sm:$0xf]
    %v243 = vld [vmem:[%s238 + $0x10] sm:$0xf]
    %v244 = vld [vmem:[%s238 + $0x14] sm:$0xf]
    %v245 = vld [vmem:[%s238 + $0x18] sm:$0xf]
    %v246 = vld [vmem:[%s238 + $0x1c] sm:$0xf]
    %v247 = vld [vmem:[%s238 + $0x20] sm:$0xf]
    %v248 = vld [vmem:[%s238 + $0x24] sm:$0xf]
    %v249 = vld [vmem:[%s238 + $0x28] sm:$0xf]
    %v250 = vld [vmem:[%s238 + $0x2c] sm:$0xf]
    %v251 = vld [vmem:[%s238 + $0x30] sm:$0xf]
    %v252 = vld [vmem:[%s238 + $0x34] sm:$0xf]
    %v253 = vld [vmem:[%s238 + $0x38] sm:$0xf]
    %v254 = vld [vmem:[%s238 + $0x3c] sm:$0xf]
    %v255 = vld [vmem:[%s2 + $0x1] sm:$0x1]
    %v256 = vlaneseq
    %v257 = vshrl.u32 %v256, 7
    %v258 = vsub.s32 0, %v257
    %v259 = vrot.slane %v255, %v258
    %v276 = vunpack.c.l.b16 %v239
    %v277 = vunpack.c.l.b16 %v240
    %v278 = vunpack.c.l.b16 %v241
    %v279 = vunpack.c.l.b16 %v242
    %v280 = vunpack.c.l.b16 %v243
    %v281 = vunpack.c.l.b16 %v244
    %v282 = vunpack.c.l.b16 %v245
    %v283 = vunpack.c.l.b16 %v246
    %v284 = vunpack.c.l.b16 %v247
    %v285 = vunpack.c.l.b16 %v248
    %v286 = vunpack.c.l.b16 %v249
    %v287 = vunpack.c.l.b16 %v250
    %v288 = vunpack.c.l.b16 %v251
    %v289 = vunpack.c.l.b16 %v252
    %v290 = vunpack.c.l.b16 %v253
    %v291 = vunpack.c.l.b16 %v254
    %v292 = vpack.c.b16 %v277, %v276
    %v293 = vpack.c.b16 %v279, %v278
    %v294 = vpack.c.b16 %v281, %v280
    %v295 = vpack.c.b16 %v283, %v282
    %v296 = vpack.c.b16 %v285, %v284
    %v297 = vpack.c.b16 %v287, %v286
    %v298 = vpack.c.b16 %v289, %v288
    %v299 = vpack.c.b16 %v291, %v290
    %308 = vmatprep.subr.bf16.mxu0 0
    %309 = vmatpush1.bf16.msra.mxu0 %v292
    %310 = vmatprep.subr.bf16.mxu0 0
    %311 = vmatpush1.bf16.msra.mxu0 %v293
    %312 = vmatprep.subr.bf16.mxu0 0
    %313 = vmatpush1.bf16.msra.mxu0 %v294
    %314 = vmatprep.subr.bf16.mxu0 0
    %315 = vmatpush1.bf16.msra.mxu0 %v295
    %316 = vmatprep.subr.bf16.mxu0 0
    %317 = vmatpush1.bf16.msra.mxu0 %v296
    %318 = vmatprep.subr.bf16.mxu0 0
    %319 = vmatpush1.bf16.msra.mxu0 %v297
    %320 = vmatprep.subr.bf16.mxu0 0
    %321 = vmatpush1.bf16.msra.mxu0 %v298
    %322 = vmatprep.subr.bf16.mxu0 0
    %323 = vmatpush1.bf16.msra.mxu0 %v299
    %324 = vmatprep.subr.bf16.mxu0 0
    %325 = vmatpush1.bf16.msra.mxu0 0
    %326 = vmatprep.subr.bf16.mxu0 0
    %327 = vmatpush1.bf16.msra.mxu0 0
    %328 = vmatprep.subr.bf16.mxu0 0
    %329 = vmatpush1.bf16.msra.mxu0 0
    %330 = vmatprep.subr.bf16.mxu0 0
    %331 = vmatpush1.bf16.msra.mxu0 0
    %332 = vmatprep.subr.bf16.mxu0 0
    %333 = vmatpush1.bf16.msra.mxu0 0
    %334 = vmatprep.subr.bf16.mxu0 0
    %335 = vmatpush1.bf16.msra.mxu0 0
    %336 = vmatprep.subr.bf16.mxu0 0
    %337 = vmatpush1.bf16.msra.mxu0 0
    %338 = vmatprep.subr.bf16.mxu0 0
    %339 = vmatpush1.bf16.msra.mxu0 0
    %340 = vmatprep.mubr.bf16.mxu0 0
    %341 = vmatmul.mubr.bf16.gmra.mrb[0].mxu0 %v234
    %v342 = vpop.f32.mrb[0].mxu0
    %v343 = vadd.f32 %v259, %v342
    %v344 = vpop.f32.mrb[0].mxu0
    %v345 = vpop.f32.mrb[0].mxu0
    %v346 = vadd.f32 %v259, %v345
    %v347 = vpop.f32.mrb[0].mxu0
    %348 = vmatprep.mubr.bf16.mxu0 0
    %349 = vmatmul.mubr.bf16.gmra.mrb[0].mxu0 %v235
    %v350 = vpop.f32.mrb[0].mxu0
    %v351 = vadd.f32 %v259, %v350
    %v352 = vpop.f32.mrb[0].mxu0
    %v353 = vpop.f32.mrb[0].mxu0
    %v354 = vadd.f32 %v259, %v353
    %v355 = vpop.f32.mrb[0].mxu0
    %356 = vmatprep.mubr.bf16.mxu0 0
    %357 = vmatmul.mubr.bf16.gmra.mrb[0].mxu0 %v236
    %v358 = vpop.f32.mrb[0].mxu0
    %v359 = vadd.f32 %v259, %v358
    %v360 = vpop.f32.mrb[0].mxu0
    %v361 = vpop.f32.mrb[0].mxu0
    %v362 = vadd.f32 %v259, %v361
    %v363 = vpop.f32.mrb[0].mxu0
    %364 = vmatprep.mubr.bf16.mxu0 0
    %365 = vmatmul.mubr.bf16.gmra.mrb[0].mxu0 %v237
    %v366 = vpop.f32.mrb[0].mxu0
    %v367 = vadd.f32 %v259, %v366
    %v368 = vpop.f32.mrb[0].mxu0
    %v369 = vpop.f32.mrb[0].mxu0
    %v370 = vadd.f32 %v259, %v369
    %v371 = vpop.f32.mrb[0].mxu0
    %372 = vdwg.mxu0
    %v373 = vmax.f32 %v343, 0.0
    %v374 = vmax.f32 %v346, 0.0
    %v375 = vmax.f32 %v351, 0.0
    %v376 = vmax.f32 %v354, 0.0
    %v377 = vmax.f32 %v359, 0.0
    %v378 = vmax.f32 %v362, 0.0
    %v379 = vmax.f32 %v367, 0.0
    %v380 = vmax.f32 %v370, 0.0
    %v381 = vadd.f32 %v226, %v373
    %v382 = vadd.f32 %v227, %v374
    %v383 = vadd.f32 %v228, %v375
    %v384 = vadd.f32 %v229, %v376
    %v385 = vadd.f32 %v230, %v377
    %v386 = vadd.f32 %v231, %v378
    %v387 = vadd.f32 %v232, %v379
    %v388 = vadd.f32 %v233, %v380
    %v389 = vpack.c.bf16 %v382, %v381
    %v390 = vpack.c.bf16 %v384, %v383
    %v391 = vpack.c.bf16 %v386, %v385
    %v392 = vpack.c.bf16 %v388, %v387
    %s393 = scalar_lea.vmem [#allocation5], 128
    %v394 = vld [vmem:[%s393] sm:$0xf]
    %v395 = vld [vmem:[%s393 + $0x4] sm:$0xf]
    %v396 = vld [vmem:[%s393 + $0x8] sm:$0xf]
    %v397 = vld [vmem:[%s393 + $0xc] sm:$0xf]
    %v398 = vld [vmem:[%s393 + $0x10] sm:$0xf]
    %v399 = vld [vmem:[%s393 + $0x14] sm:$0xf]
    %v400 = vld [vmem:[%s393 + $0x18] sm:$0xf]
    %v401 = vld [vmem:[%s393 + $0x1c] sm:$0xf]
    %v402 = vld [vmem:[%s393 + $0x20] sm:$0xf]
    %v403 = vld [vmem:[%s393 + $0x24] sm:$0xf]
    %v404 = vld [vmem:[%s393 + $0x28] sm:$0xf]
    %v405 = vld [vmem:[%s393 + $0x2c] sm:$0xf]
    %v406 = vld [vmem:[%s393 + $0x30] sm:$0xf]
    %v407 = vld [vmem:[%s393 + $0x34] sm:$0xf]
    %v408 = vld [vmem:[%s393 + $0x38] sm:$0xf]
    %v409 = vld [vmem:[%s393 + $0x3c] sm:$0xf]
    %v410 = vld [vmem:[%s2 + $0x2] sm:$0x1]
    %v411 = vlaneseq
    %v412 = vshrl.u32 %v411, 7
    %v413 = vsub.s32 0, %v412
    %v414 = vrot.slane %v410, %v413
    %v431 = vunpack.c.l.b16 %v394
    %v432 = vunpack.c.l.b16 %v395
    %v433 = vunpack.c.l.b16 %v396
    %v434 = vunpack.c.l.b16 %v397
    %v435 = vunpack.c.l.b16 %v398
    %v436 = vunpack.c.l.b16 %v399
    %v437 = vunpack.c.l.b16 %v400
    %v438 = vunpack.c.l.b16 %v401
    %v439 = vunpack.c.l.b16 %v402
    %v440 = vunpack.c.l.b16 %v403
    %v441 = vunpack.c.l.b16 %v404
    %v442 = vunpack.c.l.b16 %v405
    %v443 = vunpack.c.l.b16 %v406
    %v444 = vunpack.c.l.b16 %v407
    %v445 = vunpack.c.l.b16 %v408
    %v446 = vunpack.c.l.b16 %v409
    %v447 = vpack.c.b16 %v432, %v431
    %v448 = vpack.c.b16 %v434, %v433
    %v449 = vpack.c.b16 %v436, %v435
    %v450 = vpack.c.b16 %v438, %v437
    %v451 = vpack.c.b16 %v440, %v439
    %v452 = vpack.c.b16 %v442, %v441
    %v453 = vpack.c.b16 %v444, %v443
    %v454 = vpack.c.b16 %v446, %v445
    %463 = vmatprep.subr.bf16.mxu0 0
    %464 = vmatpush1.bf16.msra.mxu0 %v447
    %465 = vmatprep.subr.bf16.mxu0 0
    %466 = vmatpush1.bf16.msra.mxu0 %v448
    %467 = vmatprep.subr.bf16.mxu0 0
    %468 = vmatpush1.bf16.msra.mxu0 %v449
    %469 = vmatprep.subr.bf16.mxu0 0
    %470 = vmatpush1.bf16.msra.mxu0 %v450
    %471 = vmatprep.subr.bf16.mxu0 0
    %472 = vmatpush1.bf16.msra.mxu0 %v451
    %473 = vmatprep.subr.bf16.mxu0 0
    %474 = vmatpush1.bf16.msra.mxu0 %v452
    %475 = vmatprep.subr.bf16.mxu0 0
    %476 = vmatpush1.bf16.msra.mxu0 %v453
    %477 = vmatprep.subr.bf16.mxu0 0
    %478 = vmatpush1.bf16.msra.mxu0 %v454
    %479 = vmatprep.subr.bf16.mxu0 0
    %480 = vmatpush1.bf16.msra.mxu0 0
    %481 = vmatprep.subr.bf16.mxu0 0
    %482 = vmatpush1.bf16.msra.mxu0 0
    %483 = vmatprep.subr.bf16.mxu0 0
    %484 = vmatpush1.bf16.msra.mxu0 0
    %485 = vmatprep.subr.bf16.mxu0 0
    %486 = vmatpush1.bf16.msra.mxu0 0
    %487 = vmatprep.subr.bf16.mxu0 0
    %488 = vmatpush1.bf16.msra.mxu0 0
    %489 = vmatprep.subr.bf16.mxu0 0
    %490 = vmatpush1.bf16.msra.mxu0 0
    %491 = vmatprep.subr.bf16.mxu0 0
    %492 = vmatpush1.bf16.msra.mxu0 0
    %493 = vmatprep.subr.bf16.mxu0 0
    %494 = vmatpush1.bf16.msra.mxu0 0
    %495 = vmatprep.mubr.bf16.mxu0 0
    %496 = vmatmul.mubr.bf16.gmra.mrb[0].mxu0 %v389
    %v497 = vpop.f32.mrb[0].mxu0
    %v498 = vadd.f32 %v414, %v497
    %v499 = vpop.f32.mrb[0].mxu0
    %v500 = vpop.f32.mrb[0].mxu0
    %v501 = vadd.f32 %v414, %v500
    %v502 = vpop.f32.mrb[0].mxu0
    %503 = vmatprep.mubr.bf16.mxu0 0
    %504 = vmatmul.mubr.bf16.gmra.mrb[0].mxu0 %v390
    %v505 = vpop.f32.mrb[0].mxu0
    %v506 = vadd.f32 %v414, %v505
    %v507 = vpop.f32.mrb[0].mxu0
    %v508 = vpop.f32.mrb[0].mxu0
    %v509 = vadd.f32 %v414, %v508
    %v510 = vpop.f32.mrb[0].mxu0
    %511 = vmatprep.mubr.bf16.mxu0 0
    %512 = vmatmul.mubr.bf16.gmra.mrb[0].mxu0 %v391
    %v513 = vpop.f32.mrb[0].mxu0
    %v514 = vadd.f32 %v414, %v513
    %v515 = vpop.f32.mrb[0].mxu0
    %v516 = vpop.f32.mrb[0].mxu0
    %v517 = vadd.f32 %v414, %v516
    %v518 = vpop.f32.mrb[0].mxu0
    %519 = vmatprep.mubr.bf16.mxu0 0
    %520 = vmatmul.mubr.bf16.gmra.mrb[0].mxu0 %v392
    %v521 = vpop.f32.mrb[0].mxu0
    %v522 = vadd.f32 %v414, %v521
    %v523 = vpop.f32.mrb[0].mxu0
    %v524 = vpop.f32.mrb[0].mxu0
    %v525 = vadd.f32 %v414, %v524
    %v526 = vpop.f32.mrb[0].mxu0
    %527 = vdwg.mxu0
    %v528 = vmax.f32 %v498, 0.0
    %v529 = vmax.f32 %v501, 0.0
    %v530 = vmax.f32 %v506, 0.0
    %v531 = vmax.f32 %v509, 0.0
    %v532 = vmax.f32 %v514, 0.0
    %v533 = vmax.f32 %v517, 0.0
    %v534 = vmax.f32 %v522, 0.0
    %v535 = vmax.f32 %v525, 0.0
    %536 = vst [vmem:[#allocation7] sm:$0xff] %v528
    %537 = vst [vmem:[#allocation7 + $0x8] sm:$0xff] %v529
    %538 = vst [vmem:[#allocation7 + $0x10] sm:$0xff] %v530
    %539 = vst [vmem:[#allocation7 + $0x18] sm:$0xff] %v531
    %540 = vst [vmem:[#allocation7 + $0x20] sm:$0xff] %v532
    %541 = vst [vmem:[#allocation7 + $0x28] sm:$0xff] %v533
    %542 = vst [vmem:[#allocation7 + $0x30] sm:$0xff] %v534
    %543 = vst [vmem:[#allocation7 + $0x38] sm:$0xff] %v535
    // Predicated region
    $region22: #{tpu_custom_call.1} parent=1 // pred_check
      _
    $region23: #{tpu_custom_call.1} parent=1 // pred_check_branch
      %545 = sbr.rel (0) target = $region25
    $region24: #{tpu_custom_call.1} parent=1 // pred_region
      %s547 = ssub.s32 1024, 1024
      %548 = vsyncadd [#allocation4], %s547
      %s549 = sshll.u32 [#allocation7], 4
      %s550 = int_to_ptr.vmem [resolvable:$true] %s549
      %555 = dma.vmem_to_hbm [thread:$0]  %s550, 1024, %s3, [#allocation4], 128, 128, 8
    $region25: #{tpu_custom_call.1} parent=1 // pred_fallthru
      _
    // Predicated region
    $region26: #{tpu_custom_call.1} parent=1 // pred_check
      _
    $region27: #{tpu_custom_call.1} parent=1 // pred_check_branch
      %557 = sbr.rel (0) target = $region29
    $region28: #{tpu_custom_call.1} parent=1 // pred_region
      %558 = dma.done [#allocation4], 1024
    $region29: #{tpu_custom_call.1} parent=1 // pred_fallthru
      _
    %559 = vsyncpa [#allocation3], 1
    %560 = vsyncpa [#allocation6], 1
    %561 = vsyncpa [#allocation4], 1

</llo_original>
